<compile_context>
chip_gen: v6e
topology: v6e:2x2x1
jax: 0.10.0
libtpu: 0.0.40
codegen_flags: <defaults>
</compile_context>

<pallas_src>
import functools

import jax
import jax.numpy as jnp
from jax.experimental import pallas as pl
from jax.experimental.pallas import tpu as pltpu


def _embedding_kernel(y_ref, w_ref, pos_ref, o1_ref, o2_ref, *, embedding_dim):
    """One grid step: (TM, 2nq) @ (2nq, 2E) fused matmul + positional add."""
    E = embedding_dim
    # Single MXU pass, f32 accumulation regardless of I/O dtype.
    proj = jnp.dot(y_ref[...], w_ref[...], preferred_element_type=jnp.float32)
    # Lane-aligned column split (E is a multiple of 128 in practice).
    o2_ref[...] = proj[:, :E].astype(o2_ref.dtype)                 # y_emb(y)
    o1_ref[...] = (proj[:, E:] + pos_ref[...]).astype(o1_ref.dtype)  # x_emb(x)+pos


def _pick_batch_tile(batch, length, target_rows=1024):
    """Sequences per tile: ~target_rows matmul rows, but keep >= 2 grid steps."""
    bt = max(1, min(batch, target_rows // max(length, 1)))
    if batch >= 2:
        # Keep at least 2 parallel grid steps so v7x's two TensorCores both work.
        bt = min(bt, -(-batch // 2))
    return bt


def sakt_embedding(y, wx_t, wy_t, pos_table, *, n_questions):
    """y: (B, L, 2*nq); wx_t: (nq, E); wy_t: (2*nq, E); pos_table: (L, E).

    Linear weights are pre-transposed to (in_features, embedding_dim).
    Returns (x_emb(x) + pos, y_emb(y)), each (B, L, E), dtype of y.
    """
    B, L, F = y.shape
    assert F == 2 * n_questions
    E = wx_t.shape[1]
    out_dtype = y.dtype
    itemsize = jnp.dtype(out_dtype).itemsize

    # --- wrapper-side prep ---------------------------------------------------
    bt = _pick_batch_tile(B, L)
    n_tiles = pl.cdiv(B, bt)
    B_pad = n_tiles * bt
    if B_pad != B:
        y = jnp.pad(y, ((0, B_pad - B), (0, 0), (0, 0)))
    TM = bt * L                                   # rows per grid step
    M_pad = B_pad * L

    y_flat = y.reshape(M_pad, F)                  # (M, 2nq), layout-free merge

    # Fused weight: cols [0:E] = Wy_t, cols [E:2E] = Wx_t stacked twice so that
    # yb @ W[:, E:] == (yb[:, :nq] + yb[:, nq:]) @ Wx_t.
    w_fused = jnp.concatenate(
        [wy_t, jnp.concatenate([wx_t, wx_t], axis=0)], axis=1
    ).astype(out_dtype)                           # (2nq, 2E)

    # Positional block pre-tiled to one output tile (kept f32 for the f32 add).
    pos_tile = jnp.tile(pos_table.astype(jnp.float32), (bt, 1))   # (TM, E)

    kernel = functools.partial(_embedding_kernel, embedding_dim=E)

    out_shapes = (
        jax.ShapeDtypeStruct((M_pad, E), out_dtype),
        jax.ShapeDtypeStruct((M_pad, E), out_dtype),
    )

    cost = pl.CostEstimate(
        flops=2 * M_pad * F * 2 * E,
        transcendentals=0,
        bytes_accessed=(y_flat.size + w_fused.size + 2 * M_pad * E) * itemsize
        + pos_tile.size * 4,
    )

    # VMEM footprint per step (double-buffered streamed operands, single-
    # buffered invariants).  Set vmem_limit_bytes only if we would exceed
    # v5e's 16 MiB scoped-VMEM default.
    vmem_bytes = (2 * TM * F * itemsize            # y tile      (x2 buffers)
                  + 2 * 2 * TM * E * itemsize      # 2 out tiles (x2 buffers)
                  + F * 2 * E * itemsize           # fused weight (x1)
                  + TM * E * 4)                    # pos tile     (x1)
    vmem_limit = None
    if vmem_bytes > 14 * 1024 * 1024:
        vmem_limit = min(int(vmem_bytes * 3 // 2), 100 * 1024 * 1024)

    single = pl.Buffered(1)  # grid-invariant operands: no double-buffering

    out1, out2 = pl.pallas_call(
        kernel,
        out_shape=out_shapes,
        grid_spec=pltpu.PrefetchScalarGridSpec(
            num_scalar_prefetch=0,
            grid=(n_tiles,),
            in_specs=[
                pl.BlockSpec((TM, F), lambda b: (b, 0)),               # y rows
                pl.BlockSpec((F, 2 * E), lambda b: (0, 0),
                             pipeline_mode=single),                    # W fused
                pl.BlockSpec((TM, E), lambda b: (0, 0),
                             pipeline_mode=single),                    # pos tile
            ],
            out_specs=[
                pl.BlockSpec((TM, E), lambda b: (b, 0)),
                pl.BlockSpec((TM, E), lambda b: (b, 0)),
            ],
        ),
        compiler_params=pltpu.CompilerParams(
            dimension_semantics=("parallel",),
            vmem_limit_bytes=vmem_limit,
        ),
        cost_estimate=cost,
    )(y_flat, w_fused, pos_tile)

    # Drop padding rows and restore (B, L, E).
    out1 = out1[: B * L].reshape(B, L, E)
    out2 = out2[: B * L].reshape(B, L, E)
    return out1, out2


def reference(y, wx_t, wy_t, pos_table, *, n_questions):
    x = y[:, :, :n_questions] + y[:, :, n_questions:]
    return x @ wx_t + pos_table[None], y @ wy_t


if __name__ == "__main__":
    # Small, lane-friendly shapes: B*L = 512 rows -> two 256-row parallel tiles.
    n_questions = 128
    length = 8
    embedding_dim = 128
    batch = 64

    key = jax.random.PRNGKey(0)
    k_y, k_wx, k_wy, k_pos = jax.random.split(key, 4)

    # Input y: (B, L, 2*nq), feature-last like PyTorch's (B, L, F) Linear.
    y = jax.random.normal(k_y, (batch, length, 2 * n_questions),
                          dtype=jnp.float32)

    # Deterministic parameters (Linear weights pre-transposed to (in, out)).
    wx_t = jax.random.normal(k_wx, (n_questions, embedding_dim),
                             dtype=jnp.float32) * 0.02
    wy_t = jax.random.normal(k_wy, (2 * n_questions, embedding_dim),
                             dtype=jnp.float32) * 0.02
    pos_table = jax.random.normal(k_pos, (length, embedding_dim),
                                  dtype=jnp.float32) * 0.02

    ref1, ref2 = reference(y, wx_t, wy_t, pos_table, n_questions=n_questions)

    # ---- f32 I/O path (exact-ish check) -------------------------------------
    out1, out2 = sakt_embedding(y, wx_t, wy_t, pos_table,
                                n_questions=n_questions)
    jax.block_until_ready((out1, out2))
    assert out1.shape == (batch, length, embedding_dim)
    assert out2.shape == (batch, length, embedding_dim)
    assert jnp.allclose(out1, ref1, atol=1e-3, rtol=1e-3)
    assert jnp.allclose(out2, ref2, atol=1e-3, rtol=1e-3)

    # ---- bf16 I/O path (halves HBM bytes; f32 accumulation inside) ----------
    out1_bf, out2_bf = sakt_embedding(y.astype(jnp.bfloat16), wx_t, wy_t,
                                      pos_table, n_questions=n_questions)
    jax.block_until_ready((out1_bf, out2_bf))
    assert out1_bf.dtype == jnp.bfloat16 and out2_bf.dtype == jnp.bfloat16
    assert jnp.allclose(out1_bf.astype(jnp.float32), ref1, atol=3e-2, rtol=0)
    assert jnp.allclose(out2_bf.astype(jnp.float32), ref2, atol=3e-2, rtol=0)

    print("KERNEL_OK")
</pallas_src>

<mosaic_0001>
module attributes {stable_mosaic.version = 11 : i64} {
  func.func @_embedding_kernel(%arg0: i32, %arg1: memref<256x256xf32, #tpu.memory_space<vmem>>, %arg2: memref<256x256xf32, #tpu.memory_space<vmem>>, %arg3: memref<256x128xf32, #tpu.memory_space<vmem>>, %arg4: memref<256x128xf32, #tpu.memory_space<vmem>>, %arg5: memref<256x128xf32, #tpu.memory_space<vmem>>) attributes {dimension_semantics = [#tpu.dimension_semantics<parallel>], iteration_bounds = array<i64: 2>, scalar_prefetch = 0 : i64, scratch_operands = 0 : i64, tpu.core_type = #tpu.core_type<tc>, window_params = [{transform_indices = @transform_0, window_bounds = array<i64: 256, 256>}, {pipeline_mode = #tpu.pipeline_mode<synchronous>, transform_indices = @transform_1, window_bounds = array<i64: 256, 256>}, {pipeline_mode = #tpu.pipeline_mode<synchronous>, transform_indices = @transform_2, window_bounds = array<i64: 256, 128>}, {transform_indices = @transform_3, window_bounds = array<i64: 256, 128>}, {transform_indices = @transform_4, window_bounds = array<i64: 256, 128>}]} {
    %c0 = arith.constant 0 : index
    %c0_0 = arith.constant 0 : index
    %0 = vector.load %arg1[%c0, %c0_0] : memref<256x256xf32, #tpu.memory_space<vmem>>, vector<256x256xf32>
    %c0_1 = arith.constant 0 : index
    %c0_2 = arith.constant 0 : index
    %1 = vector.load %arg2[%c0_1, %c0_2] : memref<256x256xf32, #tpu.memory_space<vmem>>, vector<256x256xf32>
    %cst = arith.constant dense<0.000000e+00> : vector<256x256xf32>
    %2 = tpu.matmul %0, %1, %cst {dimension_numbers = #tpu.dot_dimension_numbers<[1], [0], [0], [1], [0, 0, 1, 1], [], []>} : vector<256x256xf32>, vector<256x256xf32>, vector<256x256xf32> -> vector<256x256xf32>
    %3 = vector.extract_strided_slice %2 {offsets = [0, 0], sizes = [256, 128], strides = [1, 1]} : vector<256x256xf32> to vector<256x128xf32>
    %c0_3 = arith.constant 0 : index
    %c0_4 = arith.constant 0 : index
    %4 = vector.load %arg5[%c0_3, %c0_4] : memref<256x128xf32, #tpu.memory_space<vmem>>, vector<256x128xf32>
    tpu.vector_store %arg5[%c0_3, %c0_4], %3 {strides = array<i32>} : memref<256x128xf32, #tpu.memory_space<vmem>>, vector<256x128xf32>,
    %5 = vector.extract_strided_slice %2 {offsets = [0, 128], sizes = [256, 128], strides = [1, 1]} : vector<256x256xf32> to vector<256x128xf32>
    %c0_5 = arith.constant 0 : index
    %c0_6 = arith.constant 0 : index
    %6 = vector.load %arg3[%c0_5, %c0_6] : memref<256x128xf32, #tpu.memory_space<vmem>>, vector<256x128xf32>
    %7 = arith.addf %5, %6 : vector<256x128xf32>
    %c0_7 = arith.constant 0 : index
    %c0_8 = arith.constant 0 : index
    %8 = vector.load %arg4[%c0_7, %c0_8] : memref<256x128xf32, #tpu.memory_space<vmem>>, vector<256x128xf32>
    tpu.vector_store %arg4[%c0_7, %c0_8], %7 {strides = array<i32>} : memref<256x128xf32, #tpu.memory_space<vmem>>, vector<256x128xf32>,
    return
  }
  func.func @transform_0(%arg0: i32) -> (i32, i32) {
    %c0_i32 = arith.constant 0 : i32
    %c0_i32_0 = arith.constant 0 : i32
    return %arg0, %c0_i32 : i32, i32
  }
  func.func @transform_1(%arg0: i32) -> (i32, i32) {
    %c0_i32 = arith.constant 0 : i32
    %c0_i32_0 = arith.constant 0 : i32
    %c0_i32_1 = arith.constant 0 : i32
    return %c0_i32, %c0_i32_0 : i32, i32
  }
  func.func @transform_2(%arg0: i32) -> (i32, i32) {
    %c0_i32 = arith.constant 0 : i32
    %c0_i32_0 = arith.constant 0 : i32
    %c0_i32_1 = arith.constant 0 : i32
    return %c0_i32, %c0_i32_0 : i32, i32
  }
  func.func @transform_3(%arg0: i32) -> (i32, i32) {
    %c0_i32 = arith.constant 0 : i32
    %c0_i32_0 = arith.constant 0 : i32
    return %arg0, %c0_i32 : i32, i32
  }
  func.func @transform_4(%arg0: i32) -> (i32, i32) {
    %c0_i32 = arith.constant 0 : i32
    %c0_i32_0 = arith.constant 0 : i32
    return %arg0, %c0_i32 : i32, i32
  }
}

</mosaic_0001>

<llo_original>
// kernel: tpu_custom_call.1
$region0: #{tpu_custom_call.1}
  #allocation0 [shape = 'u32[]', space=smem, size = 0x4, offset = 0x4, fixed_abs, tag = 'smem constant byte address 0x4 - core index']
  #allocation1 [shape = 'u32[144,128]{1,0:T(1,128)}', space=vmem, size = 0x12000, scoped, tag = 'internal scratch']
  %s0 = inlined_call_operand.hbm [shape: f32[512,256], index: 0, kind: input, shape index: {}]
  %s1 = inlined_call_operand.hbm [shape: f32[256,256], index: 1, kind: input, shape index: {}]
  %s2 = inlined_call_operand.hbm [shape: f32[256,128], index: 2, kind: input, shape index: {}]
  %s3 = inlined_call_operand.hbm [shape: f32[512,128], index: 3, kind: output, shape index: {0}]
  %s4 = inlined_call_operand.hbm [shape: f32[512,128], index: 4, kind: output, shape index: {1}]
  %5 = xla_tuple %s3, %s4
  %s6 = sld [smem:[#allocation0]]
  $region65: #{tpu_custom_call.1} parent=0
    _
  %s8 = ssub.s32 1, %s6
  %s9 = scalar_select 0, %s8, %s6
  $region1: #{tpu_custom_call.1} parent=0
    #allocation2 [shape = 'u8[524288]{0}', space=vmem, size = 0x80000, scoped, tag = 'input window, operand 0']
    #allocation3 [shape = 's32[2]{0}', space=sflag, size = 0x8, scoped, tag = 'scoped memory for tpu_custom_call.1']
    #allocation4 [shape = 's32[2]{0}', space=sflag, size = 0x8, scoped, tag = 'scoped memory for tpu_custom_call.1']
    #allocation5 [shape = 'u8[262144]{0}', space=vmem, size = 0x40000, scoped, tag = 'input window, operand 1, single buffered']
    #allocation6 [shape = 's32[1]{0}', space=sflag, size = 0x4, scoped, tag = 'scoped memory for tpu_custom_call.1']
    #allocation7 [shape = 'u8[131072]{0}', space=vmem, size = 0x20000, scoped, tag = 'input window, operand 2, single buffered']
    #allocation8 [shape = 'u8[262144]{0}', space=vmem, size = 0x40000, scoped, tag = 'output window, operand 0']
    #allocation9 [shape = 'u8[262144]{0}', space=vmem, size = 0x40000, scoped, tag = 'output window, operand 1']
    #allocation10 [shape = 's32[2]{0}', space=sflag, size = 0x8, scoped, tag = 'scoped memory for tpu_custom_call.1']
    %10 = vsyncpa [#allocation3], 0
    %s11 = scalar_lea.sflag [#allocation3], 1
    %12 = vsyncpa %s11, 0
    %13 = vsyncpa [#allocation6], 0
    %14 = vsyncpa [#allocation4], 0
    %s15 = scalar_lea.sflag [#allocation4], 1
    %16 = vsyncpa %s15, 0
    %17 = vsyncpa [#allocation10], 0
    %s18 = scalar_lea.sflag [#allocation10], 1
    %19 = vsyncpa %s18, 0
    loop: start=0, step=1, limit=4
    $region2: #{tpu_custom_call.1} parent=1 // loop_pre_header
      _
    $region3: #{tpu_custom_call.1} parent=1 // loop_header
      %s21 = sphi 0, %s25
      %p22 = scmp.ge.s32.totalorder %s21, 4
      %s31 = sphi 0, %s33
      %s34 = sphi 0, %s31
      %s35 = sphi 0, %s34
      %s51 = sphi 0, %s35
      %s55 = sphi 0, %s55
      %s57 = sphi 0, %s55
      %s58 = sphi 0, %s57
      %s72 = sphi 0, %s58
      %s76 = sphi 0, %s76
      %s78 = sphi 0, %s76
      %s79 = sphi 0, %s78
      %s93 = sphi 0, %s79
      %s99 = sphi 0, %s101
      %s102 = sphi 0, %s99
      %s103 = sphi 0, %s102
      %s119 = sphi 0, %s103
      %s125 = sphi 0, %s127
      %s128 = sphi 0, %s125
      %s129 = sphi 0, %s128
      %s145 = sphi 0, %s129
    $region4: #{tpu_custom_call.1} parent=1 // loop_header_branch
      %24 = sbr.rel (%p22) target = $region8
    $region5: #{tpu_custom_call.1} parent=1 // loop_body
      %s26 = ssub.s32 %s21, 1
      %s27 = ssub.s32 %s21, 2
      %s28 = sadd.s32 %s21, 1
      %s29 = ssub.s32 %s21, %s28
      %p30 = scmp.eq.s32.totalorder %s29, 0
      %s32 = sadd.s32 %s31, 1
      %s33 = scalar_select %p30, %s31, %s32
      %p36 = pneg %p30
      %p37 = scmp.eq.s32.totalorder %s21, 1
      %p38 = por %p36, %p37
      %p39 = scmp.ne.s32.totalorder %s31, %s34
      %p40 = scmp.eq.s32.totalorder %s21, 0
      %p41 = por %p39, %p40
      %p42 = scmp.ne.s32.totalorder %s31, %s34
      %p43 = scmp.eq.s32.totalorder %s26, 1
      %p44 = por %p42, %p43
      %p45 = scmp.ne.s32.totalorder %s34, %s35
      %p46 = scmp.eq.s32.totalorder %s26, 0
      %p47 = por %p45, %p46
      %p48 = scmp.ne.s32.totalorder %s34, %s35
      %p49 = scmp.eq.s32.totalorder %s27, 1
      %p50 = por %p48, %p49
      %p52 = scmp.ne.s32.totalorder %s35, %s51
      %p53 = scmp.eq.s32.totalorder %s27, 0
      %p54 = por %p52, %p53
      %s56 = sadd.s32 %s55, 1
      %p59 = scmp.eq.s32.totalorder %s21, 1
      %p60 = scmp.ne.s32.totalorder %s55, %s57
      %p61 = scmp.eq.s32.totalorder %s21, 0
      %p62 = por %p60, %p61
      %p63 = scmp.ne.s32.totalorder %s55, %s57
      %p64 = scmp.eq.s32.totalorder %s26, 1
      %p65 = por %p63, %p64
      %p66 = scmp.ne.s32.totalorder %s57, %s58
      %p67 = scmp.eq.s32.totalorder %s26, 0
      %p68 = por %p66, %p67
      %p69 = scmp.ne.s32.totalorder %s57, %s58
      %p70 = scmp.eq.s32.totalorder %s27, 1
      %p71 = por %p69, %p70
      %p73 = scmp.ne.s32.totalorder %s58, %s72
      %p74 = scmp.eq.s32.totalorder %s27, 0
      %p75 = por %p73, %p74
      %s77 = sadd.s32 %s76, 1
      %p80 = scmp.eq.s32.totalorder %s21, 1
      %p81 = scmp.ne.s32.totalorder %s76, %s78
      %p82 = scmp.eq.s32.totalorder %s21, 0
      %p83 = por %p81, %p82
      %p84 = scmp.ne.s32.totalorder %s76, %s78
      %p85 = scmp.eq.s32.totalorder %s26, 1
      %p86 = por %p84, %p85
      %p87 = scmp.ne.s32.totalorder %s78, %s79
      %p88 = scmp.eq.s32.totalorder %s26, 0
      %p89 = por %p87, %p88
      %p90 = scmp.ne.s32.totalorder %s78, %s79
      %p91 = scmp.eq.s32.totalorder %s27, 1
      %p92 = por %p90, %p91
      %p94 = scmp.ne.s32.totalorder %s79, %s93
      %p95 = scmp.eq.s32.totalorder %s27, 0
      %p96 = por %p94, %p95
      %s97 = ssub.s32 %s21, %s28
      %p98 = scmp.eq.s32.totalorder %s97, 0
      %s100 = sadd.s32 %s99, 1
      %s101 = scalar_select %p98, %s99, %s100
      %p104 = pneg %p98
      %p105 = scmp.eq.s32.totalorder %s21, 1
      %p106 = por %p104, %p105
      %p107 = scmp.ne.s32.totalorder %s99, %s102
      %p108 = scmp.eq.s32.totalorder %s21, 0
      %p109 = por %p107, %p108
      %p110 = scmp.ne.s32.totalorder %s99, %s102
      %p111 = scmp.eq.s32.totalorder %s26, 1
      %p112 = por %p110, %p111
      %p113 = scmp.ne.s32.totalorder %s102, %s103
      %p114 = scmp.eq.s32.totalorder %s26, 0
      %p115 = por %p113, %p114
      %p116 = scmp.ne.s32.totalorder %s102, %s103
      %p117 = scmp.eq.s32.totalorder %s27, 1
      %p118 = por %p116, %p117
      %p120 = scmp.ne.s32.totalorder %s103, %s119
      %p121 = scmp.eq.s32.totalorder %s27, 0
      %p122 = por %p120, %p121
      %s123 = ssub.s32 %s21, %s28
      %p124 = scmp.eq.s32.totalorder %s123, 0
      %s126 = sadd.s32 %s125, 1
      %s127 = scalar_select %p124, %s125, %s126
      %p130 = pneg %p124
      %p131 = scmp.eq.s32.totalorder %s21, 1
      %p132 = por %p130, %p131
      %p133 = scmp.ne.s32.totalorder %s125, %s128
      %p134 = scmp.eq.s32.totalorder %s21, 0
      %p135 = por %p133, %p134
      %p136 = scmp.ne.s32.totalorder %s125, %s128
      %p137 = scmp.eq.s32.totalorder %s26, 1
      %p138 = por %p136, %p137
      %p139 = scmp.ne.s32.totalorder %s128, %s129
      %p140 = scmp.eq.s32.totalorder %s26, 0
      %p141 = por %p139, %p140
      %p142 = scmp.ne.s32.totalorder %s128, %s129
      %p143 = scmp.eq.s32.totalorder %s27, 1
      %p144 = por %p142, %p143
      %p146 = scmp.ne.s32.totalorder %s129, %s145
      %p147 = scmp.eq.s32.totalorder %s27, 0
      %p148 = por %p146, %p147
      %p149 = scmp.le.s32.totalorder 1, %s21
      %p150 = scmp.lt.s32.totalorder %s21, 3
      %p151 = pnand %p149, %p150
      %p152 = pneg %p151
      // Predicated region
      $region9: #{tpu_custom_call.1} parent=5 // pred_check
        _
      $region10: #{tpu_custom_call.1} parent=5 // pred_check_branch
        %154 = sbr.rel (%p151) target = $region12
      $region11: #{tpu_custom_call.1} parent=5 // pred_region
        %s155 = ssub.s32 %s21, 1
        // Predicated region
        $region13: #{tpu_custom_call.1} parent=11 // pred_check
          %p156 = pneg %p68
        $region14: #{tpu_custom_call.1} parent=11 // pred_check_branch
          %158 = sbr.rel (%p156) target = $region16
        $region15: #{tpu_custom_call.1} parent=11 // pred_region
          %s160 = ssub.s32 8192, 8192
          %161 = vsyncadd [#allocation6], %s160
          %s162 = sshll.u32 [#allocation5], 4
          %s163 = int_to_ptr.vmem [resolvable:$true] %s162
          %168 = dma.hbm_to_vmem [thread:$0]  %s1, 8192, %s163, [#allocation6], 256, 256, 16
        $region16: #{tpu_custom_call.1} parent=11 // pred_fallthru
          _
        // Predicated region
        $region17: #{tpu_custom_call.1} parent=11 // pred_check
          %p169 = pneg %p89
        $region18: #{tpu_custom_call.1} parent=11 // pred_check_branch
          %171 = sbr.rel (%p169) target = $region20
        $region19: #{tpu_custom_call.1} parent=11 // pred_region
          %s173 = ssub.s32 4096, 4096
          %174 = vsyncadd [#allocation6], %s173
          %s175 = sshll.u32 [#allocation7], 4
          %s176 = int_to_ptr.vmem [resolvable:$true] %s175
          %181 = dma.hbm_to_vmem [thread:$0]  %s2, 4096, %s176, [#allocation6], 128, 128, 8
        $region20: #{tpu_custom_call.1} parent=11 // pred_fallthru
          _
      $region12: #{tpu_custom_call.1} parent=5 // pred_fallthru
        _
      %p182 = scmp.lt.s32.totalorder %s21, 2
      // Predicated region
      $region21: #{tpu_custom_call.1} parent=5 // pred_check
        %p183 = pneg %p182
      $region22: #{tpu_custom_call.1} parent=5 // pred_check_branch
        %185 = sbr.rel (%p183) target = $region24
      $region23: #{tpu_custom_call.1} parent=5 // pred_region
        // Predicated region
        $region25: #{tpu_custom_call.1} parent=23 // pred_check
          %p186 = pneg %p41
        $region26: #{tpu_custom_call.1} parent=23 // pred_check_branch
          %188 = sbr.rel (%p186) target = $region28
        $region27: #{tpu_custom_call.1} parent=23 // pred_region
          %s189 = sand.u32 %s31, 1
          %s190 = scalar_lea.sflag [#allocation3], %s189
          %s191 = sand.u32 %s31, 1
          %s192 = smul.addr %s191, 512
          %s193 = scalar_lea.vmem [#allocation2], %s192
          %s194 = smul.u32 32, %s21
          %s196 = ssub.s32 8192, 8192
          %197 = vsyncadd %s190, %s196
          %s198 = smul.addr %s194, 2
          %s199 = smul.addr %s198, 128
          %s200 = scalar_lea.hbm %s0, %s199
          %s201 = sshll.u32 %s193, 4
          %s202 = int_to_ptr.vmem [resolvable:$true] %s201
          %207 = dma.hbm_to_vmem [thread:$0]  %s200, 8192, %s202, %s190, 256, 256, 16
        $region28: #{tpu_custom_call.1} parent=23 // pred_fallthru
          _
      $region24: #{tpu_custom_call.1} parent=5 // pred_fallthru
        _
      %p208 = scmp.le.s32.totalorder 1, %s21
      %p209 = scmp.lt.s32.totalorder %s21, 3
      %p210 = pnand %p208, %p209
      %p211 = pneg %p210
      // Predicated region
      $region29: #{tpu_custom_call.1} parent=5 // pred_check
        _
      $region30: #{tpu_custom_call.1} parent=5 // pred_check_branch
        %213 = sbr.rel (%p210) target = $region32
      $region31: #{tpu_custom_call.1} parent=5 // pred_region
        %s214 = ssub.s32 %s21, 1
        %s215 = sand.u32 %s34, 1
        %s216 = scalar_lea.sflag [#allocation3], %s215
        %s217 = sand.u32 %s34, 1
        %s218 = smul.addr %s217, 512
        %s219 = scalar_lea.vmem [#allocation2], %s218
        // Predicated region
        $region33: #{tpu_custom_call.1} parent=31 // pred_check
          %p220 = pneg %p47
        $region34: #{tpu_custom_call.1} parent=31 // pred_check_branch
          %222 = sbr.rel (%p220) target = $region36
        $region35: #{tpu_custom_call.1} parent=31 // pred_region
          %223 = dma.done %s216, 8192
        $region36: #{tpu_custom_call.1} parent=31 // pred_fallthru
          _
        // Predicated region
        $region37: #{tpu_custom_call.1} parent=31 // pred_check
          %p224 = pneg %p68
        $region38: #{tpu_custom_call.1} parent=31 // pred_check_branch
          %226 = sbr.rel (%p224) target = $region40
        $region39: #{tpu_custom_call.1} parent=31 // pred_region
          %227 = dma.done [#allocation6], 8192
        $region40: #{tpu_custom_call.1} parent=31 // pred_fallthru
          _
        // Predicated region
        $region41: #{tpu_custom_call.1} parent=31 // pred_check
          %p228 = pneg %p89
        $region42: #{tpu_custom_call.1} parent=31 // pred_check_branch
          %230 = sbr.rel (%p228) target = $region44
        $region43: #{tpu_custom_call.1} parent=31 // pred_region
          %231 = dma.done [#allocation6], 4096
        $region44: #{tpu_custom_call.1} parent=31 // pred_fallthru
          _
        %s232 = sand.u32 %s34, 1
        %s233 = scalar_lea.sflag [#allocation3], %s232
        %s234 = sand.u32 %s34, 1
        %s235 = smul.addr %s234, 512
        %s236 = scalar_lea.vmem [#allocation2], %s235
        %p237 = pneg %p47
        %p238 = pneg %p44
        %p239 = pneg %p68
        %p240 = pneg %p65
        %p241 = pneg %p89
        %p242 = pneg %p86
        %p243 = pneg %p115
        %p244 = pneg %p112
        %s245 = sand.u32 %s102, 1
        %s246 = scalar_lea.sflag [#allocation4], %s245
        %s247 = sand.u32 %s102, 1
        %s248 = smul.addr %s247, 256
        %s249 = scalar_lea.vmem [#allocation8], %s248
        %p250 = pneg %p141
        %p251 = pneg %p138
        %s252 = sand.u32 %s128, 1
        %s253 = scalar_lea.sflag [#allocation10], %s252
        %s254 = sand.u32 %s128, 1
        %s255 = smul.addr %s254, 256
        %s256 = scalar_lea.vmem [#allocation9], %s255
        %s257 = smul.u32 32, %s26
        %s258 = smul.u32 32, %s26
        %s259 = smul.u32 32, %s26
        %v260 = vld [vmem:[%s219] sm:$0xff]
        %v261 = vld [vmem:[%s219 + $0x8] sm:$0xff]
        %v262 = vld [vmem:[%s219 + $0x10] sm:$0xff]
        %v263 = vld [vmem:[%s219 + $0x18] sm:$0xff]
        %v264 = vld [vmem:[%s219 + $0x20] sm:$0xff]
        %v265 = vld [vmem:[%s219 + $0x28] sm:$0xff]
        %v266 = vld [vmem:[%s219 + $0x30] sm:$0xff]
        %v267 = vld [vmem:[%s219 + $0x38] sm:$0xff]
        %v268 = vld [vmem:[%s219 + $0x40] sm:$0xff]
        %v269 = vld [vmem:[%s219 + $0x48] sm:$0xff]
        %v270 = vld [vmem:[%s219 + $0x50] sm:$0xff]
        %v271 = vld [vmem:[%s219 + $0x58] sm:$0xff]
        %v272 = vld [vmem:[%s219 + $0x60] sm:$0xff]
        %v273 = vld [vmem:[%s219 + $0x68] sm:$0xff]
        %v274 = vld [vmem:[%s219 + $0x70] sm:$0xff]
        %v275 = vld [vmem:[%s219 + $0x78] sm:$0xff]
        %v276 = vld [vmem:[%s219 + $0x80] sm:$0xff]
        %v277 = vld [vmem:[%s219 + $0x88] sm:$0xff]
        %v278 = vld [vmem:[%s219 + $0x90] sm:$0xff]
        %v279 = vld [vmem:[%s219 + $0x98] sm:$0xff]
        %v280 = vld [vmem:[%s219 + $0xa0] sm:$0xff]
        %v281 = vld [vmem:[%s219 + $0xa8] sm:$0xff]
        %v282 = vld [vmem:[%s219 + $0xb0] sm:$0xff]
        %v283 = vld [vmem:[%s219 + $0xb8] sm:$0xff]
        %v284 = vld [vmem:[%s219 + $0xc0] sm:$0xff]
        %v285 = vld [vmem:[%s219 + $0xc8] sm:$0xff]
        %v286 = vld [vmem:[%s219 + $0xd0] sm:$0xff]
        %v287 = vld [vmem:[%s219 + $0xd8] sm:$0xff]
        %v288 = vld [vmem:[%s219 + $0xe0] sm:$0xff]
        %v289 = vld [vmem:[%s219 + $0xe8] sm:$0xff]
        %v290 = vld [vmem:[%s219 + $0xf0] sm:$0xff]
        %v291 = vld [vmem:[%s219 + $0xf8] sm:$0xff]
        %v292 = vld [vmem:[%s219 + $0x100] sm:$0xff]
        %v293 = vld [vmem:[%s219 + $0x108] sm:$0xff]
        %v294 = vld [vmem:[%s219 + $0x110] sm:$0xff]
        %v295 = vld [vmem:[%s219 + $0x118] sm:$0xff]
        %v296 = vld [vmem:[%s219 + $0x120] sm:$0xff]
        %v297 = vld [vmem:[%s219 + $0x128] sm:$0xff]
        %v298 = vld [vmem:[%s219 + $0x130] sm:$0xff]
        %v299 = vld [vmem:[%s219 + $0x138] sm:$0xff]
        %v300 = vld [vmem:[%s219 + $0x140] sm:$0xff]
        %v301 = vld [vmem:[%s219 + $0x148] sm:$0xff]
        %v302 = vld [vmem:[%s219 + $0x150] sm:$0xff]
        %v303 = vld [vmem:[%s219 + $0x158] sm:$0xff]
        %v304 = vld [vmem:[%s219 + $0x160] sm:$0xff]
        %v305 = vld [vmem:[%s219 + $0x168] sm:$0xff]
        %v306 = vld [vmem:[%s219 + $0x170] sm:$0xff]
        %v307 = vld [vmem:[%s219 + $0x178] sm:$0xff]
        %v308 = vld [vmem:[%s219 + $0x180] sm:$0xff]
        %v309 = vld [vmem:[%s219 + $0x188] sm:$0xff]
        %v310 = vld [vmem:[%s219 + $0x190] sm:$0xff]
        %v311 = vld [vmem:[%s219 + $0x198] sm:$0xff]
        %v312 = vld [vmem:[%s219 + $0x1a0] sm:$0xff]
        %v313 = vld [vmem:[%s219 + $0x1a8] sm:$0xff]
        %v314 = vld [vmem:[%s219 + $0x1b0] sm:$0xff]
        %v315 = vld [vmem:[%s219 + $0x1b8] sm:$0xff]
        %v316 = vld [vmem:[%s219 + $0x1c0] sm:$0xff]
        %v317 = vld [vmem:[%s219 + $0x1c8] sm:$0xff]
        %v318 = vld [vmem:[%s219 + $0x1d0] sm:$0xff]
        %v319 = vld [vmem:[%s219 + $0x1d8] sm:$0xff]
        %v320 = vld [vmem:[%s219 + $0x1e0] sm:$0xff]
        %v321 = vld [vmem:[%s219 + $0x1e8] sm:$0xff]
        %v322 = vld [vmem:[%s219 + $0x1f0] sm:$0xff]
        %v323 = vld [vmem:[%s219 + $0x1f8] sm:$0xff]
        %v324 = vld [vmem:[#allocation5] sm:$0xff]
        %v325 = vld [vmem:[#allocation5 + $0x8] sm:$0xff]
        %v326 = vld [vmem:[#allocation5 + $0x10] sm:$0xff]
        %v327 = vld [vmem:[#allocation5 + $0x18] sm:$0xff]
        %v328 = vld [vmem:[#allocation5 + $0x20] sm:$0xff]
        %v329 = vld [vmem:[#allocation5 + $0x28] sm:$0xff]
        %v330 = vld [vmem:[#allocation5 + $0x30] sm:$0xff]
        %v331 = vld [vmem:[#allocation5 + $0x38] sm:$0xff]
        %v332 = vld [vmem:[#allocation5 + $0x40] sm:$0xff]
        %v333 = vld [vmem:[#allocation5 + $0x48] sm:$0xff]
        %v334 = vld [vmem:[#allocation5 + $0x50] sm:$0xff]
        %v335 = vld [vmem:[#allocation5 + $0x58] sm:$0xff]
        %v336 = vld [vmem:[#allocation5 + $0x60] sm:$0xff]
        %v337 = vld [vmem:[#allocation5 + $0x68] sm:$0xff]
        %v338 = vld [vmem:[#allocation5 + $0x70] sm:$0xff]
        %v339 = vld [vmem:[#allocation5 + $0x78] sm:$0xff]
        %v340 = vld [vmem:[#allocation5 + $0x80] sm:$0xff]
        %v341 = vld [vmem:[#allocation5 + $0x88] sm:$0xff]
        %v342 = vld [vmem:[#allocation5 + $0x90] sm:$0xff]
        %v343 = vld [vmem:[#allocation5 + $0x98] sm:$0xff]
        %v344 = vld [vmem:[#allocation5 + $0xa0] sm:$0xff]
        %v345 = vld [vmem:[#allocation5 + $0xa8] sm:$0xff]
        %v346 = vld [vmem:[#allocation5 + $0xb0] sm:$0xff]
        %v347 = vld [vmem:[#allocation5 + $0xb8] sm:$0xff]
        %v348 = vld [vmem:[#allocation5 + $0xc0] sm:$0xff]
        %v349 = vld [vmem:[#allocation5 + $0xc8] sm:$0xff]
        %v350 = vld [vmem:[#allocation5 + $0xd0] sm:$0xff]
        %v351 = vld [vmem:[#allocation5 + $0xd8] sm:$0xff]
        %v352 = vld [vmem:[#allocation5 + $0xe0] sm:$0xff]
        %v353 = vld [vmem:[#allocation5 + $0xe8] sm:$0xff]
        %v354 = vld [vmem:[#allocation5 + $0xf0] sm:$0xff]
        %v355 = vld [vmem:[#allocation5 + $0xf8] sm:$0xff]
        %v356 = vld [vmem:[#allocation5 + $0x100] sm:$0xff]
        %v357 = vld [vmem:[#allocation5 + $0x108] sm:$0xff]
        %v358 = vld [vmem:[#allocation5 + $0x110] sm:$0xff]
        %v359 = vld [vmem:[#allocation5 + $0x118] sm:$0xff]
        %v360 = vld [vmem:[#allocation5 + $0x120] sm:$0xff]
        %v361 = vld [vmem:[#allocation5 + $0x128] sm:$0xff]
        %v362 = vld [vmem:[#allocation5 + $0x130] sm:$0xff]
        %v363 = vld [vmem:[#allocation5 + $0x138] sm:$0xff]
        %v364 = vld [vmem:[#allocation5 + $0x140] sm:$0xff]
        %v365 = vld [vmem:[#allocation5 + $0x148] sm:$0xff]
        %v366 = vld [vmem:[#allocation5 + $0x150] sm:$0xff]
        %v367 = vld [vmem:[#allocation5 + $0x158] sm:$0xff]
        %v368 = vld [vmem:[#allocation5 + $0x160] sm:$0xff]
        %v369 = vld [vmem:[#allocation5 + $0x168] sm:$0xff]
        %v370 = vld [vmem:[#allocation5 + $0x170] sm:$0xff]
        %v371 = vld [vmem:[#allocation5 + $0x178] sm:$0xff]
        %v372 = vld [vmem:[#allocation5 + $0x180] sm:$0xff]
        %v373 = vld [vmem:[#allocation5 + $0x188] sm:$0xff]
        %v374 = vld [vmem:[#allocation5 + $0x190] sm:$0xff]
        %v375 = vld [vmem:[#allocation5 + $0x198] sm:$0xff]
        %v376 = vld [vmem:[#allocation5 + $0x1a0] sm:$0xff]
        %v377 = vld [vmem:[#allocation5 + $0x1a8] sm:$0xff]
        %v378 = vld [vmem:[#allocation5 + $0x1b0] sm:$0xff]
        %v379 = vld [vmem:[#allocation5 + $0x1b8] sm:$0xff]
        %v380 = vld [vmem:[#allocation5 + $0x1c0] sm:$0xff]
        %v381 = vld [vmem:[#allocation5 + $0x1c8] sm:$0xff]
        %v382 = vld [vmem:[#allocation5 + $0x1d0] sm:$0xff]
        %v383 = vld [vmem:[#allocation5 + $0x1d8] sm:$0xff]
        %v384 = vld [vmem:[#allocation5 + $0x1e0] sm:$0xff]
        %v385 = vld [vmem:[#allocation5 + $0x1e8] sm:$0xff]
        %v386 = vld [vmem:[#allocation5 + $0x1f0] sm:$0xff]
        %v387 = vld [vmem:[#allocation5 + $0x1f8] sm:$0xff]
        %388 = vmatprep.subr.mxu0 %v355
        %389 = vmatpush1.msra.mxu0 %v354
        %390 = vmatprep.subr.mxu0 %v353
        %391 = vmatpush1.msra.mxu0 %v352
        %392 = vmatprep.subr.mxu0 %v351
        %393 = vmatpush1.msra.mxu0 %v350
        %394 = vmatprep.subr.mxu0 %v349
        %395 = vmatpush1.msra.mxu0 %v348
        %396 = vmatprep.subr.mxu0 %v347
        %397 = vmatpush1.msra.mxu0 %v346
        %398 = vmatprep.subr.mxu0 %v345
        %399 = vmatpush1.msra.mxu0 %v344
        %400 = vmatprep.subr.mxu0 %v343
        %401 = vmatpush1.msra.mxu0 %v342
        %402 = vmatprep.subr.mxu0 %v341
        %403 = vmatpush1.msra.mxu0 %v340
        %404 = vmatprep.subr.mxu0 %v339
        %405 = vmatpush1.msra.mxu0 %v338
        %406 = vmatprep.subr.mxu0 %v337
        %407 = vmatpush1.msra.mxu0 %v336
        %408 = vmatprep.subr.mxu0 %v335
        %409 = vmatpush1.msra.mxu0 %v334
        %410 = vmatprep.subr.mxu0 %v333
        %411 = vmatpush1.msra.mxu0 %v332
        %412 = vmatprep.subr.mxu0 %v331
        %413 = vmatpush1.msra.mxu0 %v330
        %414 = vmatprep.subr.mxu0 %v329
        %415 = vmatpush1.msra.mxu0 %v328
        %416 = vmatprep.subr.mxu0 %v327
        %417 = vmatpush1.msra.mxu0 %v326
        %418 = vmatprep.subr.mxu0 %v325
        %419 = vmatpush1.msra.mxu0 %v324
        %420 = vmatprep.subr.mxu0 %v387
        %421 = vmatpush2.msra.mxu0 %v386
        %422 = vmatprep.subr.mxu0 %v385
        %423 = vmatpush2.msra.mxu0 %v384
        %424 = vmatprep.subr.mxu0 %v383
        %425 = vmatpush2.msra.mxu0 %v382
        %426 = vmatprep.subr.mxu0 %v381
        %427 = vmatpush2.msra.mxu0 %v380
        %428 = vmatprep.subr.mxu0 %v379
        %429 = vmatpush2.msra.mxu0 %v378
        %430 = vmatprep.subr.mxu0 %v377
        %431 = vmatpush2.msra.mxu0 %v376
        %432 = vmatprep.subr.mxu0 %v375
        %433 = vmatpush2.msra.mxu0 %v374
        %434 = vmatprep.subr.mxu0 %v373
        %435 = vmatpush2.msra.mxu0 %v372
        %436 = vmatprep.subr.mxu0 %v371
        %437 = vmatpush2.msra.mxu0 %v370
        %438 = vmatprep.subr.mxu0 %v369
        %439 = vmatpush2.msra.mxu0 %v368
        %440 = vmatprep.subr.mxu0 %v367
        %441 = vmatpush2.msra.mxu0 %v366
        %442 = vmatprep.subr.mxu0 %v365
        %443 = vmatpush2.msra.mxu0 %v364
        %444 = vmatprep.subr.mxu0 %v363
        %445 = vmatpush2.msra.mxu0 %v362
        %446 = vmatprep.subr.mxu0 %v361
        %447 = vmatpush2.msra.mxu0 %v360
        %448 = vmatprep.subr.mxu0 %v359
        %449 = vmatpush2.msra.mxu0 %v358
        %450 = vmatprep.subr.mxu0 %v357
        %451 = vmatpush2.msra.mxu0 %v356
        %452 = vmatprep.mubr.f32.mxu0 %v261
        %453 = vmatmul.mubr.f32.gmra.mxu0 %v260
        %v454 = vpop.f32.mrf.mxu0
        %v455 = vadd.f32 0.0, %v454
        %v456 = vpop.f32.mrf.mxu0
        %v457 = vadd.f32 0.0, %v456
        %458 = vmatprep.mubr.f32.mxu0 %v263
        %459 = vmatmul.mubr.f32.gmra.mxu0 %v262
        %v460 = vpop.f32.mrf.mxu0
        %v461 = vadd.f32 0.0, %v460
        %v462 = vpop.f32.mrf.mxu0
        %v463 = vadd.f32 0.0, %v462
        %464 = vmatprep.mubr.f32.mxu0 %v265
        %465 = vmatmul.mubr.f32.gmra.mxu0 %v264
        %v466 = vpop.f32.mrf.mxu0
        %v467 = vadd.f32 0.0, %v466
        %v468 = vpop.f32.mrf.mxu0
        %v469 = vadd.f32 0.0, %v468
        %470 = vmatprep.mubr.f32.mxu0 %v267
        %471 = vmatmul.mubr.f32.gmra.mxu0 %v266
        %v472 = vpop.f32.mrf.mxu0
        %v473 = vadd.f32 0.0, %v472
        %v474 = vpop.f32.mrf.mxu0
        %v475 = vadd.f32 0.0, %v474
        %476 = vmatprep.mubr.f32.mxu0 %v269
        %477 = vmatmul.mubr.f32.gmra.mxu0 %v268
        %v478 = vpop.f32.mrf.mxu0
        %v479 = vadd.f32 0.0, %v478
        %v480 = vpop.f32.mrf.mxu0
        %v481 = vadd.f32 0.0, %v480
        %482 = vmatprep.mubr.f32.mxu0 %v271
        %483 = vmatmul.mubr.f32.gmra.mxu0 %v270
        %v484 = vpop.f32.mrf.mxu0
        %v485 = vadd.f32 0.0, %v484
        %v486 = vpop.f32.mrf.mxu0
        %v487 = vadd.f32 0.0, %v486
        %488 = vmatprep.mubr.f32.mxu0 %v273
        %489 = vmatmul.mubr.f32.gmra.mxu0 %v272
        %v490 = vpop.f32.mrf.mxu0
        %v491 = vadd.f32 0.0, %v490
        %v492 = vpop.f32.mrf.mxu0
        %v493 = vadd.f32 0.0, %v492
        %494 = vmatprep.mubr.f32.mxu0 %v275
        %495 = vmatmul.mubr.f32.gmra.mxu0 %v274
        %v496 = vpop.f32.mrf.mxu0
        %v497 = vadd.f32 0.0, %v496
        %v498 = vpop.f32.mrf.mxu0
        %v499 = vadd.f32 0.0, %v498
        %500 = vmatprep.mubr.f32.mxu0 %v277
        %501 = vmatmul.mubr.f32.gmra.mxu0 %v276
        %v502 = vpop.f32.mrf.mxu0
        %v503 = vadd.f32 0.0, %v502
        %v504 = vpop.f32.mrf.mxu0
        %v505 = vadd.f32 0.0, %v504
        %506 = vmatprep.mubr.f32.mxu0 %v279
        %507 = vmatmul.mubr.f32.gmra.mxu0 %v278
        %v508 = vpop.f32.mrf.mxu0
        %v509 = vadd.f32 0.0, %v508
        %v510 = vpop.f32.mrf.mxu0
        %v511 = vadd.f32 0.0, %v510
        %512 = vmatprep.mubr.f32.mxu0 %v281
        %513 = vmatmul.mubr.f32.gmra.mxu0 %v280
        %v514 = vpop.f32.mrf.mxu0
        %v515 = vadd.f32 0.0, %v514
        %v516 = vpop.f32.mrf.mxu0
        %v517 = vadd.f32 0.0, %v516
        %518 = vmatprep.mubr.f32.mxu0 %v283
        %519 = vmatmul.mubr.f32.gmra.mxu0 %v282
        %v520 = vpop.f32.mrf.mxu0
        %v521 = vadd.f32 0.0, %v520
        %v522 = vpop.f32.mrf.mxu0
        %v523 = vadd.f32 0.0, %v522
        %524 = vmatprep.mubr.f32.mxu0 %v285
        %525 = vmatmul.mubr.f32.gmra.mxu0 %v284
        %v526 = vpop.f32.mrf.mxu0
        %v527 = vadd.f32 0.0, %v526
        %v528 = vpop.f32.mrf.mxu0
        %v529 = vadd.f32 0.0, %v528
        %530 = vmatprep.mubr.f32.mxu0 %v287
        %531 = vmatmul.mubr.f32.gmra.mxu0 %v286
        %v532 = vpop.f32.mrf.mxu0
        %v533 = vadd.f32 0.0, %v532
        %v534 = vpop.f32.mrf.mxu0
        %v535 = vadd.f32 0.0, %v534
        %536 = vmatprep.mubr.f32.mxu0 %v289
        %537 = vmatmul.mubr.f32.gmra.mxu0 %v288
        %v538 = vpop.f32.mrf.mxu0
        %v539 = vadd.f32 0.0, %v538
        %v540 = vpop.f32.mrf.mxu0
        %v541 = vadd.f32 0.0, %v540
        %542 = vmatprep.mubr.f32.mxu0 %v291
        %543 = vmatmul.mubr.f32.gmra.mxu0 %v290
        %v544 = vpop.f32.mrf.mxu0
        %v545 = vadd.f32 0.0, %v544
        %v546 = vpop.f32.mrf.mxu0
        %v547 = vadd.f32 0.0, %v546
        %548 = vmatprep.mubr.f32.mxu0 %v293
        %549 = vmatmul.mubr.f32.gmra.mxu0 %v292
        %v550 = vpop.f32.mrf.mxu0
        %v551 = vadd.f32 0.0, %v550
        %v552 = vpop.f32.mrf.mxu0
        %v553 = vadd.f32 0.0, %v552
        %554 = vmatprep.mubr.f32.mxu0 %v295
        %555 = vmatmul.mubr.f32.gmra.mxu0 %v294
        %v556 = vpop.f32.mrf.mxu0
        %v557 = vadd.f32 0.0, %v556
        %v558 = vpop.f32.mrf.mxu0
        %v559 = vadd.f32 0.0, %v558
        %560 = vmatprep.mubr.f32.mxu0 %v297
        %561 = vmatmul.mubr.f32.gmra.mxu0 %v296
        %v562 = vpop.f32.mrf.mxu0
        %v563 = vadd.f32 0.0, %v562
        %v564 = vpop.f32.mrf.mxu0
        %v565 = vadd.f32 0.0, %v564
        %566 = vmatprep.mubr.f32.mxu0 %v299
        %567 = vmatmul.mubr.f32.gmra.mxu0 %v298
        %v568 = vpop.f32.mrf.mxu0
        %v569 = vadd.f32 0.0, %v568
        %v570 = vpop.f32.mrf.mxu0
        %v571 = vadd.f32 0.0, %v570
        %572 = vmatprep.mubr.f32.mxu0 %v301
        %573 = vmatmul.mubr.f32.gmra.mxu0 %v300
        %v574 = vpop.f32.mrf.mxu0
        %v575 = vadd.f32 0.0, %v574
        %v576 = vpop.f32.mrf.mxu0
        %v577 = vadd.f32 0.0, %v576
        %578 = vmatprep.mubr.f32.mxu0 %v303
        %579 = vmatmul.mubr.f32.gmra.mxu0 %v302
        %v580 = vpop.f32.mrf.mxu0
        %v581 = vadd.f32 0.0, %v580
        %v582 = vpop.f32.mrf.mxu0
        %v583 = vadd.f32 0.0, %v582
        %584 = vmatprep.mubr.f32.mxu0 %v305
        %585 = vmatmul.mubr.f32.gmra.mxu0 %v304
        %v586 = vpop.f32.mrf.mxu0
        %v587 = vadd.f32 0.0, %v586
        %v588 = vpop.f32.mrf.mxu0
        %v589 = vadd.f32 0.0, %v588
        %590 = vmatprep.mubr.f32.mxu0 %v307
        %591 = vmatmul.mubr.f32.gmra.mxu0 %v306
        %v592 = vpop.f32.mrf.mxu0
        %v593 = vadd.f32 0.0, %v592
        %v594 = vpop.f32.mrf.mxu0
        %v595 = vadd.f32 0.0, %v594
        %596 = vmatprep.mubr.f32.mxu0 %v309
        %597 = vmatmul.mubr.f32.gmra.mxu0 %v308
        %v598 = vpop.f32.mrf.mxu0
        %v599 = vadd.f32 0.0, %v598
        %v600 = vpop.f32.mrf.mxu0
        %v601 = vadd.f32 0.0, %v600
        %602 = vmatprep.mubr.f32.mxu0 %v311
        %603 = vmatmul.mubr.f32.gmra.mxu0 %v310
        %v604 = vpop.f32.mrf.mxu0
        %v605 = vadd.f32 0.0, %v604
        %v606 = vpop.f32.mrf.mxu0
        %v607 = vadd.f32 0.0, %v606
        %608 = vmatprep.mubr.f32.mxu0 %v313
        %609 = vmatmul.mubr.f32.gmra.mxu0 %v312
        %v610 = vpop.f32.mrf.mxu0
        %v611 = vadd.f32 0.0, %v610
        %v612 = vpop.f32.mrf.mxu0
        %v613 = vadd.f32 0.0, %v612
        %614 = vmatprep.mubr.f32.mxu0 %v315
        %615 = vmatmul.mubr.f32.gmra.mxu0 %v314
        %v616 = vpop.f32.mrf.mxu0
        %v617 = vadd.f32 0.0, %v616
        %v618 = vpop.f32.mrf.mxu0
        %v619 = vadd.f32 0.0, %v618
        %620 = vmatprep.mubr.f32.mxu0 %v317
        %621 = vmatmul.mubr.f32.gmra.mxu0 %v316
        %v622 = vpop.f32.mrf.mxu0
        %v623 = vadd.f32 0.0, %v622
        %v624 = vpop.f32.mrf.mxu0
        %v625 = vadd.f32 0.0, %v624
        %626 = vmatprep.mubr.f32.mxu0 %v319
        %627 = vmatmul.mubr.f32.gmra.mxu0 %v318
        %v628 = vpop.f32.mrf.mxu0
        %v629 = vadd.f32 0.0, %v628
        %v630 = vpop.f32.mrf.mxu0
        %v631 = vadd.f32 0.0, %v630
        %632 = vmatprep.mubr.f32.mxu0 %v321
        %633 = vmatmul.mubr.f32.gmra.mxu0 %v320
        %v634 = vpop.f32.mrf.mxu0
        %v635 = vadd.f32 0.0, %v634
        %v636 = vpop.f32.mrf.mxu0
        %v637 = vadd.f32 0.0, %v636
        %638 = vmatprep.mubr.f32.mxu0 %v323
        %639 = vmatmul.mubr.f32.gmra.mxu0 %v322
        %v640 = vpop.f32.mrf.mxu0
        %v641 = vadd.f32 0.0, %v640
        %v642 = vpop.f32.mrf.mxu0
        %v643 = vadd.f32 0.0, %v642
        %644 = vdwg.mxu0
        %645 = vst [vmem:[%s256] sm:$0xff] %v455
        %646 = vst [vmem:[%s256 + $0x8] sm:$0xff] %v461
        %647 = vst [vmem:[%s256 + $0x10] sm:$0xff] %v467
        %648 = vst [vmem:[%s256 + $0x18] sm:$0xff] %v473
        %649 = vst [vmem:[%s256 + $0x20] sm:$0xff] %v479
        %650 = vst [vmem:[%s256 + $0x28] sm:$0xff] %v485
        %651 = vst [vmem:[%s256 + $0x30] sm:$0xff] %v491
        %652 = vst [vmem:[%s256 + $0x38] sm:$0xff] %v497
        %653 = vst [vmem:[%s256 + $0x40] sm:$0xff] %v503
        %654 = vst [vmem:[%s256 + $0x48] sm:$0xff] %v509
        %655 = vst [vmem:[%s256 + $0x50] sm:$0xff] %v515
        %656 = vst [vmem:[%s256 + $0x58] sm:$0xff] %v521
        %657 = vst [vmem:[%s256 + $0x60] sm:$0xff] %v527
        %658 = vst [vmem:[%s256 + $0x68] sm:$0xff] %v533
        %659 = vst [vmem:[%s256 + $0x70] sm:$0xff] %v539
        %660 = vst [vmem:[%s256 + $0x78] sm:$0xff] %v545
        %661 = vst [vmem:[%s256 + $0x80] sm:$0xff] %v551
        %662 = vst [vmem:[%s256 + $0x88] sm:$0xff] %v557
        %663 = vst [vmem:[%s256 + $0x90] sm:$0xff] %v563
        %664 = vst [vmem:[%s256 + $0x98] sm:$0xff] %v569
        %665 = vst [vmem:[%s256 + $0xa0] sm:$0xff] %v575
        %666 = vst [vmem:[%s256 + $0xa8] sm:$0xff] %v581
        %667 = vst [vmem:[%s256 + $0xb0] sm:$0xff] %v587
        %668 = vst [vmem:[%s256 + $0xb8] sm:$0xff] %v593
        %669 = vst [vmem:[%s256 + $0xc0] sm:$0xff] %v599
        %670 = vst [vmem:[%s256 + $0xc8] sm:$0xff] %v605
        %671 = vst [vmem:[%s256 + $0xd0] sm:$0xff] %v611
        %672 = vst [vmem:[%s256 + $0xd8] sm:$0xff] %v617
        %673 = vst [vmem:[%s256 + $0xe0] sm:$0xff] %v623
        %674 = vst [vmem:[%s256 + $0xe8] sm:$0xff] %v629
        %675 = vst [vmem:[%s256 + $0xf0] sm:$0xff] %v635
        %676 = vst [vmem:[%s256 + $0xf8] sm:$0xff] %v641
        %v677 = vld [vmem:[#allocation7] sm:$0xff]
        %v678 = vld [vmem:[#allocation7 + $0x8] sm:$0xff]
        %v679 = vld [vmem:[#allocation7 + $0x10] sm:$0xff]
        %v680 = vld [vmem:[#allocation7 + $0x18] sm:$0xff]
        %v681 = vld [vmem:[#allocation7 + $0x20] sm:$0xff]
        %v682 = vld [vmem:[#allocation7 + $0x28] sm:$0xff]
        %v683 = vld [vmem:[#allocation7 + $0x30] sm:$0xff]
        %v684 = vld [vmem:[#allocation7 + $0x38] sm:$0xff]
        %v685 = vld [vmem:[#allocation7 + $0x40] sm:$0xff]
        %v686 = vld [vmem:[#allocation7 + $0x48] sm:$0xff]
        %v687 = vld [vmem:[#allocation7 + $0x50] sm:$0xff]
        %v688 = vld [vmem:[#allocation7 + $0x58] sm:$0xff]
        %v689 = vld [vmem:[#allocation7 + $0x60] sm:$0xff]
        %v690 = vld [vmem:[#allocation7 + $0x68] sm:$0xff]
        %v691 = vld [vmem:[#allocation7 + $0x70] sm:$0xff]
        %v692 = vld [vmem:[#allocation7 + $0x78] sm:$0xff]
        %v693 = vld [vmem:[#allocation7 + $0x80] sm:$0xff]
        %v694 = vld [vmem:[#allocation7 + $0x88] sm:$0xff]
        %v695 = vld [vmem:[#allocation7 + $0x90] sm:$0xff]
        %v696 = vld [vmem:[#allocation7 + $0x98] sm:$0xff]
        %v697 = vld [vmem:[#allocation7 + $0xa0] sm:$0xff]
        %v698 = vld [vmem:[#allocation7 + $0xa8] sm:$0xff]
        %v699 = vld [vmem:[#allocation7 + $0xb0] sm:$0xff]
        %v700 = vld [vmem:[#allocation7 + $0xb8] sm:$0xff]
        %v701 = vld [vmem:[#allocation7 + $0xc0] sm:$0xff]
        %v702 = vld [vmem:[#allocation7 + $0xc8] sm:$0xff]
        %v703 = vld [vmem:[#allocation7 + $0xd0] sm:$0xff]
        %v704 = vld [vmem:[#allocation7 + $0xd8] sm:$0xff]
        %v705 = vld [vmem:[#allocation7 + $0xe0] sm:$0xff]
        %v706 = vld [vmem:[#allocation7 + $0xe8] sm:$0xff]
        %v707 = vld [vmem:[#allocation7 + $0xf0] sm:$0xff]
        %v708 = vld [vmem:[#allocation7 + $0xf8] sm:$0xff]
        %v709 = vadd.f32 %v457, %v677
        %v710 = vadd.f32 %v463, %v678
        %v711 = vadd.f32 %v469, %v679
        %v712 = vadd.f32 %v475, %v680
        %v713 = vadd.f32 %v481, %v681
        %v714 = vadd.f32 %v487, %v682
        %v715 = vadd.f32 %v493, %v683
        %v716 = vadd.f32 %v499, %v684
        %v717 = vadd.f32 %v505, %v685
        %v718 = vadd.f32 %v511, %v686
        %v719 = vadd.f32 %v517, %v687
        %v720 = vadd.f32 %v523, %v688
        %v721 = vadd.f32 %v529, %v689
        %v722 = vadd.f32 %v535, %v690
        %v723 = vadd.f32 %v541, %v691
        %v724 = vadd.f32 %v547, %v692
        %v725 = vadd.f32 %v553, %v693
        %v726 = vadd.f32 %v559, %v694
        %v727 = vadd.f32 %v565, %v695
        %v728 = vadd.f32 %v571, %v696
        %v729 = vadd.f32 %v577, %v697
        %v730 = vadd.f32 %v583, %v698
        %v731 = vadd.f32 %v589, %v699
        %v732 = vadd.f32 %v595, %v700
        %v733 = vadd.f32 %v601, %v701
        %v734 = vadd.f32 %v607, %v702
        %v735 = vadd.f32 %v613, %v703
        %v736 = vadd.f32 %v619, %v704
        %v737 = vadd.f32 %v625, %v705
        %v738 = vadd.f32 %v631, %v706
        %v739 = vadd.f32 %v637, %v707
        %v740 = vadd.f32 %v643, %v708
        %741 = vst [vmem:[%s249] sm:$0xff] %v709
        %742 = vst [vmem:[%s249 + $0x8] sm:$0xff] %v710
        %743 = vst [vmem:[%s249 + $0x10] sm:$0xff] %v711
        %744 = vst [vmem:[%s249 + $0x18] sm:$0xff] %v712
        %745 = vst [vmem:[%s249 + $0x20] sm:$0xff] %v713
        %746 = vst [vmem:[%s249 + $0x28] sm:$0xff] %v714
        %747 = vst [vmem:[%s249 + $0x30] sm:$0xff] %v715
        %748 = vst [vmem:[%s249 + $0x38] sm:$0xff] %v716
        %749 = vst [vmem:[%s249 + $0x40] sm:$0xff] %v717
        %750 = vst [vmem:[%s249 + $0x48] sm:$0xff] %v718
        %751 = vst [vmem:[%s249 + $0x50] sm:$0xff] %v719
        %752 = vst [vmem:[%s249 + $0x58] sm:$0xff] %v720
        %753 = vst [vmem:[%s249 + $0x60] sm:$0xff] %v721
        %754 = vst [vmem:[%s249 + $0x68] sm:$0xff] %v722
        %755 = vst [vmem:[%s249 + $0x70] sm:$0xff] %v723
        %756 = vst [vmem:[%s249 + $0x78] sm:$0xff] %v724
        %757 = vst [vmem:[%s249 + $0x80] sm:$0xff] %v725
        %758 = vst [vmem:[%s249 + $0x88] sm:$0xff] %v726
        %759 = vst [vmem:[%s249 + $0x90] sm:$0xff] %v727
        %760 = vst [vmem:[%s249 + $0x98] sm:$0xff] %v728
        %761 = vst [vmem:[%s249 + $0xa0] sm:$0xff] %v729
        %762 = vst [vmem:[%s249 + $0xa8] sm:$0xff] %v730
        %763 = vst [vmem:[%s249 + $0xb0] sm:$0xff] %v731
        %764 = vst [vmem:[%s249 + $0xb8] sm:$0xff] %v732
        %765 = vst [vmem:[%s249 + $0xc0] sm:$0xff] %v733
        %766 = vst [vmem:[%s249 + $0xc8] sm:$0xff] %v734
        %767 = vst [vmem:[%s249 + $0xd0] sm:$0xff] %v735
        %768 = vst [vmem:[%s249 + $0xd8] sm:$0xff] %v736
        %769 = vst [vmem:[%s249 + $0xe0] sm:$0xff] %v737
        %770 = vst [vmem:[%s249 + $0xe8] sm:$0xff] %v738
        %771 = vst [vmem:[%s249 + $0xf0] sm:$0xff] %v739
        %772 = vst [vmem:[%s249 + $0xf8] sm:$0xff] %v740
        %s773 = sand.u32 %s102, 1
        %s774 = scalar_lea.sflag [#allocation4], %s773
        %s775 = sand.u32 %s102, 1
        %s776 = smul.addr %s775, 256
        %s777 = scalar_lea.vmem [#allocation8], %s776
        %s778 = sand.u32 %s128, 1
        %s779 = scalar_lea.sflag [#allocation10], %s778
        %s780 = sand.u32 %s128, 1
        %s781 = smul.addr %s780, 256
        %s782 = scalar_lea.vmem [#allocation9], %s781
        // Predicated region
        $region45: #{tpu_custom_call.1} parent=31 // pred_check
          %p783 = pneg %p112
        $region46: #{tpu_custom_call.1} parent=31 // pred_check_branch
          %785 = sbr.rel (%p783) target = $region48
        $region47: #{tpu_custom_call.1} parent=31 // pred_region
          %s786 = smul.u32 32, %s26
          %s788 = ssub.s32 4096, 4096
          %789 = vsyncadd %s774, %s788
          %s790 = smul.addr %s786, 128
          %s791 = scalar_lea.hbm %s3, %s790
          %s792 = sshll.u32 %s777, 4
          %s793 = int_to_ptr.vmem [resolvable:$true] %s792
          %798 = dma.vmem_to_hbm [thread:$0]  %s793, 4096, %s791, %s774, 128, 128, 8
        $region48: #{tpu_custom_call.1} parent=31 // pred_fallthru
          _
        // Predicated region
        $region49: #{tpu_custom_call.1} parent=31 // pred_check
          %p799 = pneg %p138
        $region50: #{tpu_custom_call.1} parent=31 // pred_check_branch
          %801 = sbr.rel (%p799) target = $region52
        $region51: #{tpu_custom_call.1} parent=31 // pred_region
          %s802 = smul.u32 32, %s26
          %s804 = ssub.s32 4096, 4096
          %805 = vsyncadd %s779, %s804
          %s806 = smul.addr %s802, 128
          %s807 = scalar_lea.hbm %s4, %s806
          %s808 = sshll.u32 %s782, 4
          %s809 = int_to_ptr.vmem [resolvable:$true] %s808
          %814 = dma.vmem_to_hbm [thread:$0]  %s809, 4096, %s807, %s779, 128, 128, 8
        $region52: #{tpu_custom_call.1} parent=31 // pred_fallthru
          _
      $region32: #{tpu_custom_call.1} parent=5 // pred_fallthru
        _
      %p815 = scmp.le.s32.totalorder 2, %s21
      // Predicated region
      $region53: #{tpu_custom_call.1} parent=5 // pred_check
        %p816 = pneg %p815
      $region54: #{tpu_custom_call.1} parent=5 // pred_check_branch
        %818 = sbr.rel (%p816) target = $region56
      $region55: #{tpu_custom_call.1} parent=5 // pred_region
        %s819 = ssub.s32 %s21, 2
        // Predicated region
        $region57: #{tpu_custom_call.1} parent=55 // pred_check
          %p820 = pneg %p118
        $region58: #{tpu_custom_call.1} parent=55 // pred_check_branch
          %822 = sbr.rel (%p820) target = $region60
        $region59: #{tpu_custom_call.1} parent=55 // pred_region
          %s823 = sand.u32 %s103, 1
          %s824 = scalar_lea.sflag [#allocation4], %s823
          %s825 = sand.u32 %s103, 1
          %s826 = smul.addr %s825, 256
          %s827 = scalar_lea.vmem [#allocation8], %s826
          %828 = dma.done %s824, 4096
        $region60: #{tpu_custom_call.1} parent=55 // pred_fallthru
          _
        // Predicated region
        $region61: #{tpu_custom_call.1} parent=55 // pred_check
          %p829 = pneg %p144
        $region62: #{tpu_custom_call.1} parent=55 // pred_check_branch
          %831 = sbr.rel (%p829) target = $region64
        $region63: #{tpu_custom_call.1} parent=55 // pred_region
          %s832 = sand.u32 %s129, 1
          %s833 = scalar_lea.sflag [#allocation10], %s832
          %s834 = sand.u32 %s129, 1
          %s835 = smul.addr %s834, 256
          %s836 = scalar_lea.vmem [#allocation9], %s835
          %837 = dma.done %s833, 4096
        $region64: #{tpu_custom_call.1} parent=55 // pred_fallthru
          _
      $region56: #{tpu_custom_call.1} parent=5 // pred_fallthru
        _
    $region6: #{tpu_custom_call.1} parent=1 // loop_footer
      %s25 = sadd.s32 1, %s21
    $region7: #{tpu_custom_call.1} parent=1 // loop_footer_branch
      %20 = sbr.rel target = $region3
    $region8: #{tpu_custom_call.1} parent=1 // loop_exit
      _
    %838 = vsyncpa [#allocation3], 1
    %s839 = scalar_lea.sflag [#allocation3], 1
    %840 = vsyncpa %s839, 1
    %841 = vsyncpa [#allocation6], 1
    %842 = vsyncpa [#allocation4], 1
    %s843 = scalar_lea.sflag [#allocation4], 1
    %844 = vsyncpa %s843, 1
    %845 = vsyncpa [#allocation10], 1
    %s846 = scalar_lea.sflag [#allocation10], 1
    %847 = vsyncpa %s846, 1

</llo_original>
